<compile_context>
chip_gen: v7x
topology: tpu7x:2x2x1
jax: 0.10.0
libtpu: 0.0.40
codegen_flags: <defaults>
</compile_context>

<pallas_src>
import jax
import jax.numpy as jnp
from jax.experimental import pallas as pl
from jax.experimental.pallas import tpu as pltpu


def _gemv_kernel(x_ref, w_ref, b_ref, o_ref):
    # x: (tb, D) in VMEM, w: (1, D) lane-dense in VMEM, b: (1,) scalar in SMEM.
    x = x_ref[...]                     # (tb, D)
    w = w_ref[...]                     # (1, D) broadcasts over rows
    b = b_ref[0]                       # scalar read from SMEM
    # Row-wise dot product on VPU (mul) + XLU (lane reduce); f32 accumulate.
    acc = jnp.sum(x.astype(jnp.float32) * w.astype(jnp.float32),
                  axis=-1, keepdims=True)            # (tb, 1)
    o_ref[...] = (acc + b).astype(o_ref.dtype)


_TILE_B = 512        # rows per block on the large-batch path (multiple of 8)
_SMALL_B = 1024      # below this a single un-gridded call is cheapest


def binary_classification_forward(x, weight, bias):
    """x: (B, D); weight: (1, D) (torch nn.Linear layout); bias: (1,)."""
    B, D = x.shape
    weight = weight.reshape(1, D).astype(x.dtype)     # stays lane-dense, no transpose
    bias = bias.reshape(1).astype(jnp.float32)

    if B <= _SMALL_B:
        # Whole problem fits trivially in VMEM: no grid, one DMA per operand,
        # bias as an SMEM scalar.
        return pl.pallas_call(
            _gemv_kernel,
            out_shape=jax.ShapeDtypeStruct((B, 1), x.dtype),
            in_specs=[
                pl.BlockSpec(memory_space=pltpu.MemorySpace.VMEM),   # x
                pl.BlockSpec(memory_space=pltpu.MemorySpace.VMEM),   # w (1, D)
                pl.BlockSpec(memory_space=pltpu.MemorySpace.SMEM),   # bias scalar
            ],
            out_specs=pl.BlockSpec(memory_space=pltpu.MemorySpace.VMEM),
        )(x, weight, bias)

    # Large-batch path: tile over batch so BlockSpec double-buffers the x
    # HBM->VMEM stream (the only real traffic in a GEMV); "parallel" lets the
    # grid shard across TensorCores where available (e.g. v7x megacore).
    tb = _TILE_B
    pad = (-B) % tb
    if pad:
        x = jnp.pad(x, ((0, pad), (0, 0)))
    Bp = B + pad
    out = pl.pallas_call(
        _gemv_kernel,
        out_shape=jax.ShapeDtypeStruct((Bp, 1), x.dtype),
        grid_spec=pltpu.PrefetchScalarGridSpec(
            num_scalar_prefetch=0,
            grid=(Bp // tb,),
            in_specs=[
                pl.BlockSpec((tb, D), lambda i: (i, 0)),             # x tile
                pl.BlockSpec((1, D), lambda i: (0, 0)),              # w, resident
                pl.BlockSpec(memory_space=pltpu.MemorySpace.SMEM),   # bias scalar
            ],
            out_specs=pl.BlockSpec((tb, 1), lambda i: (i, 0)),
        ),
        compiler_params=pltpu.CompilerParams(
            dimension_semantics=("parallel",),
        ),
    )(x, weight, bias)
    return out[:B]


if __name__ == "__main__":
    key = jax.random.PRNGKey(0)
    kx, kw, kb = jax.random.split(key, 3)

    batch = 8
    input_dimension = 32

    # torch.nn.Linear(input_dimension, 1) parameter shapes
    weight = jax.random.normal(kw, (1, input_dimension), dtype=jnp.float32) * 0.1
    bias = jax.random.normal(kb, (1,), dtype=jnp.float32) * 0.1

    x = jax.random.normal(kx, (batch, input_dimension), dtype=jnp.float32)

    out = binary_classification_forward(x, weight, bias)
    out = jax.block_until_ready(out)

    # Reference check in plain JAX
    ref = x @ weight.T + bias
    assert out.shape == (batch, 1)
    assert jnp.allclose(out, ref, atol=1e-5, rtol=1e-5)

    print("KERNEL_OK")
</pallas_src>

<mosaic_0001>
module attributes {stable_mosaic.version = 11 : i64} {
  func.func @_gemv_kernel(%arg0: memref<8x32xf32, #tpu.memory_space<vmem>>, %arg1: memref<1x32xf32, #tpu.memory_space<vmem>>, %arg2: memref<1xf32, #tpu.memory_space<smem>>, %arg3: memref<8x1xf32, #tpu.memory_space<vmem>>) attributes {dimension_semantics = [], scalar_prefetch = 0 : i64, scratch_operands = 0 : i64, tpu.core_type = #tpu.core_type<tc>} {
    %c0 = arith.constant 0 : index
    %c0_0 = arith.constant 0 : index
    %0 = vector.load %arg0[%c0, %c0_0] : memref<8x32xf32, #tpu.memory_space<vmem>>, vector<8x32xf32>
    %c0_1 = arith.constant 0 : index
    %c0_2 = arith.constant 0 : index
    %1 = vector.load %arg1[%c0_1, %c0_2] : memref<1x32xf32, #tpu.memory_space<vmem>>, vector<1x32xf32>
    %c0_3 = arith.constant 0 : index
    %2 = memref.load %arg2[%c0_3] : memref<1xf32, #tpu.memory_space<smem>>
    %3 = vector.broadcast %1 : vector<1x32xf32> to vector<8x32xf32>
    %4 = arith.mulf %0, %3 : vector<8x32xf32>
    %cst = arith.constant dense<0.000000e+00> : vector<8xf32>
    %5 = vector.multi_reduction <add>, %4, %cst [1] : vector<8x32xf32> to vector<8xf32>
    %6 = vector.shape_cast %5 : vector<8xf32> to vector<8x1xf32>
    %7 = vector.broadcast %2 : f32 to vector<8x1xf32>
    %8 = arith.addf %6, %7 : vector<8x1xf32>
    %c0_4 = arith.constant 0 : index
    %c0_5 = arith.constant 0 : index
    %9 = vector.load %arg3[%c0_4, %c0_5] : memref<8x1xf32, #tpu.memory_space<vmem>>, vector<8x1xf32>
    tpu.vector_store %arg3[%c0_4, %c0_5], %8 {strides = array<i32>} : memref<8x1xf32, #tpu.memory_space<vmem>>, vector<8x1xf32>,
    return
  }
}

</mosaic_0001>

<llo_original>
// kernel: tpu_custom_call.1
$region0: #{tpu_custom_call.1}
  #allocation0 [shape = 'u32[]', space=smem, size = 0x4, offset = 0x4, fixed_abs, tag = 'smem constant byte address 0x4 - core index']
  #allocation1 [shape = 'u32[144,128]{1,0:T(1,128)}', space=vmem, size = 0x12000, scoped, tag = 'internal scratch']
  #allocation2 [shape = 'f32[1]{0:T(128)S(6)}', space=smem, size = 0x200, scoped, tag = 'scoped memory for tpu_custom_call.1']
  %s0 = inlined_call_operand.hbm [shape: f32[8,32], index: 0, kind: input, shape index: {}]
  %s1 = inlined_call_operand.vmem [shape: f32[1,32], index: 1, kind: input, shape index: {}]
  %s2 = inlined_call_operand.<no memory space> [shape: f32[1], index: 2, kind: input, shape index: {}]
  %s3 = inlined_call_operand.vmem [shape: f32[8,1], index: 3, kind: output, shape index: {}]
  %s4 = sld [smem:[#allocation0]]
  $region26: #{tpu_custom_call.1} parent=0
    _
  %s6 = ssub.s32 1, %s4
  %s7 = scalar_select 0, %s6, %s4
  %8 = sst [smem:[#allocation2]] %s2
  $region1: #{tpu_custom_call.1} parent=0
    #allocation3 [shape = 'u8[4096]{0}', space=vmem, size = 0x1000, scoped, tag = 'input window, operand 0, single buffered']
    #allocation4 [shape = 's32[1]{0}', space=sflag, size = 0x4, scoped, tag = 'scoped memory for tpu_custom_call.1']
    %9 = vsyncpa [#allocation4], 0
    // Predicated region
    $region2: #{tpu_custom_call.1} parent=1 // pred_check
      _
    $region3: #{tpu_custom_call.1} parent=1 // pred_check_branch
      %11 = sbr.rel (0) target = $region5
    $region4: #{tpu_custom_call.1} parent=1 // pred_region
      %s13 = ssub.s32 128, 128
      %14 = vsyncadd [#allocation4], %s13
      %s16 = sshll.u32 [#allocation3], 4
      %s17 = int_to_ptr.vmem [resolvable:$true] %s16
      %19 = dma.hbm_to_vmem [thread:$0]  %s0, 128, %s17, [#allocation4]
    $region5: #{tpu_custom_call.1} parent=1 // pred_fallthru
      _
    // Predicated region
    $region6: #{tpu_custom_call.1} parent=1 // pred_check
      _
    $region7: #{tpu_custom_call.1} parent=1 // pred_check_branch
      %21 = sbr.rel (0) target = $region9
    $region8: #{tpu_custom_call.1} parent=1 // pred_region
      _
    $region9: #{tpu_custom_call.1} parent=1 // pred_fallthru
      _
    // Predicated region
    $region10: #{tpu_custom_call.1} parent=1 // pred_check
      _
    $region11: #{tpu_custom_call.1} parent=1 // pred_check_branch
      %23 = sbr.rel (0) target = $region13
    $region12: #{tpu_custom_call.1} parent=1 // pred_region
      _
    $region13: #{tpu_custom_call.1} parent=1 // pred_fallthru
      _
    // Predicated region
    $region14: #{tpu_custom_call.1} parent=1 // pred_check
      _
    $region15: #{tpu_custom_call.1} parent=1 // pred_check_branch
      %25 = sbr.rel (0) target = $region17
    $region16: #{tpu_custom_call.1} parent=1 // pred_region
      %26 = dma.done [#allocation4], 128
    $region17: #{tpu_custom_call.1} parent=1 // pred_fallthru
      _
    %v27 = vld [vmem:[#allocation3] sm:$0xff]
    %v28 = vld [vmem:[%s1] sm:$0x1]
    %s29 = sld [smem:[#allocation2]]
    %v31 = vlaneseq
    %v32 = vshrl.u32 %v31, 7
    %v33 = vsub.s32 0, %v32
    %v34 = vrot.slane %v28, %v33
    %v36 = vmul.f32 %v27, %v34
    %vm37 = vcmask 261120
    %v38 = vsel %vm37, %v36, 0.0
    %39 = vadd.xlane.f32.xlu0 %v38
    %v40 = vpop.xlane.xlu0 %39
    %v41 = vstv %s29
    %v42 = vadd.f32 %v40, %v41
    %vm43 = vcmask 7168
    %44 = vst.msk [vmem:[%s3] sm:$0xff] %vm43, %v42
    // Predicated region
    $region18: #{tpu_custom_call.1} parent=1 // pred_check
      _
    $region19: #{tpu_custom_call.1} parent=1 // pred_check_branch
      %46 = sbr.rel (0) target = $region21
    $region20: #{tpu_custom_call.1} parent=1 // pred_region
      _
    $region21: #{tpu_custom_call.1} parent=1 // pred_fallthru
      _
    // Predicated region
    $region22: #{tpu_custom_call.1} parent=1 // pred_check
      _
    $region23: #{tpu_custom_call.1} parent=1 // pred_check_branch
      %48 = sbr.rel (0) target = $region25
    $region24: #{tpu_custom_call.1} parent=1 // pred_region
      _
    $region25: #{tpu_custom_call.1} parent=1 // pred_fallthru
      _
    %49 = vsyncpa [#allocation4], 1

</llo_original>
